<compile_context>
chip_gen: v7x
topology: tpu7x:2x2x1
jax: 0.10.0
libtpu: 0.0.40
codegen_flags: <defaults>
</compile_context>

<pallas_src>
import jax
import jax.numpy as jnp
from jax.experimental import pallas as pl
from jax.experimental.pallas import tpu as pltpu


def _round_up(x, m):
    return ((x + m - 1) // m) * m


def fused_premodel_kernel(x_ref, cw_ref, gw_ref, fb_ref, o_ref):
    # One grid step == one image.
    # x_ref : (Hp, K1)      bf16  padded NHWC slab; lanes = Wp*Cin (+ const-1)
    # cw_ref: (k*K1, WCO)   bf16  k banded conv-weight mats (bias folded)
    # gw_ref: (WCO, NC_PAD) bf16  GAP(1/S)+fc weight, zero padded
    # fb_ref: (1, NC_PAD)   f32   fc bias
    # o_ref : (1, NC_PAD)   f32   this image's logits row
    Hp, K1 = x_ref.shape
    k = cw_ref.shape[0] // K1
    H = Hp - (k - 1)

    # Aligned full-block load, upcast once. Row-shifted slices (di = 0..k-1)
    # are taken from the f32 value and cast back to bf16 for the MXU.
    xv = x_ref[...].astype(jnp.float32)

    # backbone: conv as k shifted accumulating MXU matmuls + ReLU.
    conv = None
    for di in range(k):
        lhs = xv[di:di + H, :].astype(jnp.bfloat16)                # (H, K1)
        term = jnp.dot(lhs, cw_ref[di * K1:(di + 1) * K1, :],
                       preferred_element_type=jnp.float32)          # (H, WCO)
        conv = term if conv is None else conv + term
    conv = jnp.maximum(conv, 0.0)

    # neck GAP: vreg-aligned pair-folds of rows (plain VPU adds); the
    # remaining row sum is deferred until after the FC matmul, so the only
    # cross-sublane reduce is on a tiny (rows, NC_PAD) tensor.
    r = conv
    while r.shape[0] > 8 and r.shape[0] % 2 == 0:
        h = r.shape[0] // 2
        r = r[:h, :] + r[h:, :]

    # head.fc (1/S and pooling-over-width folded into gw; bias in f32).
    part = jnp.dot(r.astype(jnp.bfloat16), gw_ref[...],
                   preferred_element_type=jnp.float32)              # (rows, NC_PAD)
    logits = jnp.sum(part, axis=0, keepdims=True) + fb_ref[...]     # (1, NC_PAD)
    o_ref[...] = logits


def pre_model_forward(x_nchw, conv_w, conv_b, fc_w, fc_b, *, k=3, pad=1):
    """x_nchw: (N, Cin, H, W); conv_w: (Cout, Cin, k, k); fc_w: (NC, Cout)."""
    N, Cin, H, W = x_nchw.shape
    Cout = conv_w.shape[0]
    NC = fc_w.shape[0]
    assert 2 * pad == k - 1, "kernel assumes 'same' convolution"
    S = H * W
    Hp, Wp = H + 2 * pad, W + 2 * pad

    f32, bf16 = jnp.float32, jnp.bfloat16

    WCO = W * Cout                         # conv-output lane width (j*Cout+co)
    BIAS_LANE = Wp * Cin                   # constant-1 column (conv bias input)
    K1 = _round_up(BIAS_LANE + 1, 128)     # lane-dense slab width
    NC_PAD = _round_up(NC, 128)

    # --- raw padded NHWC slab, packed 2D and lane padded (no im2col) --------
    x = jnp.transpose(x_nchw, (0, 2, 3, 1)).astype(f32)             # (N,H,W,Cin)
    xp = jnp.pad(x, ((0, 0), (pad, pad), (pad, pad), (0, 0)))        # (N,Hp,Wp,Cin)
    slab = jnp.zeros((N, Hp, K1), f32)
    slab = slab.at[:, :, :Wp * Cin].set(xp.reshape(N, Hp, Wp * Cin))
    slab = slab.at[:, :, BIAS_LANE].set(1.0)
    slab = slab.astype(bf16)

    # --- banded conv-weight matrices: tap di maps slab lane (jp*Cin+c) to
    #     conv lane (j*Cout+co) with weight w[co,c,di,jp-j]; bias folded into
    #     the constant-1 lane of tap 0. ---------------------------------------
    w_t = jnp.transpose(conv_w, (2, 3, 1, 0)).astype(f32)            # (k,k,Cin,Cout)
    eye_w = jnp.eye(W, dtype=f32)
    cw = jnp.zeros((k, K1, WCO), f32)
    for di in range(k):
        band = jnp.zeros((Wp * Cin, WCO), f32)
        for dj in range(k):
            band = band.at[dj * Cin:dj * Cin + W * Cin, :].add(
                jnp.kron(eye_w, w_t[di, dj]))
        cw = cw.at[di, :Wp * Cin, :].set(band)
    cw = cw.at[0, BIAS_LANE, :].set(jnp.tile(conv_b.astype(f32), W))
    cw2d = cw.reshape(k * K1, WCO).astype(bf16)

    # --- GAP + fc fold: (W*Cout) -> NC_PAD with the 1/S mean folded in ------
    gw = jnp.zeros((WCO, NC_PAD), f32)
    gw = gw.at[:, :NC].set(jnp.tile(jnp.transpose(fc_w).astype(f32) / S, (W, 1)))
    gw = gw.astype(bf16)
    fb = jnp.zeros((1, NC_PAD), f32).at[0, :NC].set(fc_b.astype(f32))

    out_pad = pl.pallas_call(
        fused_premodel_kernel,
        out_shape=jax.ShapeDtypeStruct((N, 1, NC_PAD), f32),
        grid=(N,),
        in_specs=[
            pl.BlockSpec((None, Hp, K1), lambda n: (n, 0, 0)),   # per-image slab
            pl.BlockSpec((k * K1, WCO), lambda n: (0, 0)),       # conv bands (const)
            pl.BlockSpec((WCO, NC_PAD), lambda n: (0, 0)),       # GAP+fc weight (const)
            pl.BlockSpec((1, NC_PAD), lambda n: (0, 0)),         # fc bias (const)
        ],
        # per-image output block -> unmasked lane-dense store, batch parallel.
        out_specs=pl.BlockSpec((None, 1, NC_PAD), lambda n: (n, 0, 0)),
        compiler_params=pltpu.CompilerParams(
            dimension_semantics=("parallel",)),
    )(slab, cw2d, gw, fb)

    return out_pad[:, 0, :NC]


def reference_forward(x_nchw, conv_w, conv_b, fc_w, fc_b):
    conv = jax.lax.conv_general_dilated(
        x_nchw, conv_w, window_strides=(1, 1), padding=((1, 1), (1, 1)),
        dimension_numbers=('NCHW', 'OIHW', 'NCHW'))
    feat = jnp.maximum(conv + conv_b[None, :, None, None], 0.0)
    pooled = feat.mean(axis=(2, 3))
    return pooled @ fc_w.T + fc_b


if __name__ == "__main__":
    key = jax.random.PRNGKey(0)
    k_x, k_cw, k_cb, k_fw, k_fb = jax.random.split(key, 5)

    N, Cin, H, W = 2, 4, 16, 16
    Cout, num_classes, ksz = 32, 10, 3

    x = jax.random.normal(k_x, (N, Cin, H, W), dtype=jnp.float32)
    conv_w = jax.random.normal(k_cw, (Cout, Cin, ksz, ksz), dtype=jnp.float32) * 0.1
    conv_b = jax.random.normal(k_cb, (Cout,), dtype=jnp.float32) * 0.1
    fc_w = jax.random.normal(k_fw, (num_classes, Cout), dtype=jnp.float32) * 0.1
    fc_b = jax.random.normal(k_fb, (num_classes,), dtype=jnp.float32) * 0.1

    out = pre_model_forward(x, conv_w, conv_b, fc_w, fc_b, k=ksz, pad=1)
    out = jax.block_until_ready(out)

    ref = reference_forward(x, conv_w, conv_b, fc_w, fc_b)
    assert out.shape == (N, num_classes)
    # bf16 MXU inputs with f32 accumulation -> relaxed tolerance vs f32 ref.
    err = jnp.max(jnp.abs(out - ref))
    assert jnp.allclose(out, ref, atol=1e-2, rtol=1e-2), f"max abs err = {err}"

    print("KERNEL_OK")
</pallas_src>

<mosaic_0001>
module attributes {stable_mosaic.version = 11 : i64} {
  func.func @fused_premodel_kernel(%arg0: i32, %arg1: memref<1x18x128xbf16, #tpu.memory_space<vmem>>, %arg2: memref<384x512xbf16, #tpu.memory_space<vmem>>, %arg3: memref<512x128xbf16, #tpu.memory_space<vmem>>, %arg4: memref<1x128xf32, #tpu.memory_space<vmem>>, %arg5: memref<1x1x128xf32, #tpu.memory_space<vmem>>) attributes {dimension_semantics = [#tpu.dimension_semantics<parallel>], iteration_bounds = array<i64: 2>, scalar_prefetch = 0 : i64, scratch_operands = 0 : i64, tpu.core_type = #tpu.core_type<tc>, window_params = [{transform_indices = @transform_0, window_bounds = array<i64: 1, 18, 128>}, {pipeline_mode = #tpu.pipeline_mode<synchronous>, transform_indices = @transform_1, window_bounds = array<i64: 384, 512>}, {pipeline_mode = #tpu.pipeline_mode<synchronous>, transform_indices = @transform_2, window_bounds = array<i64: 512, 128>}, {pipeline_mode = #tpu.pipeline_mode<synchronous>, transform_indices = @transform_3, window_bounds = array<i64: 1, 128>}, {transform_indices = @transform_4, window_bounds = array<i64: 1, 1, 128>}]} {
    %c0 = arith.constant 0 : index
    %c0_0 = arith.constant 0 : index
    %c0_1 = arith.constant 0 : index
    %0 = vector.load %arg1[%c0, %c0_0, %c0_1] : memref<1x18x128xbf16, #tpu.memory_space<vmem>>, vector<1x18x128xbf16>
    %1 = vector.shape_cast %0 : vector<1x18x128xbf16> to vector<18x128xbf16>
    %2 = arith.extf %1 : vector<18x128xbf16> to vector<18x128xf32>
    %3 = vector.extract_strided_slice %2 {offsets = [0, 0], sizes = [16, 128], strides = [1, 1]} : vector<18x128xf32> to vector<16x128xf32>
    %4 = arith.truncf %3 : vector<16x128xf32> to vector<16x128xbf16>
    %c0_2 = arith.constant 0 : index
    %c0_3 = arith.constant 0 : index
    %5 = vector.load %arg2[%c0_2, %c0_3] : memref<384x512xbf16, #tpu.memory_space<vmem>>, vector<128x512xbf16>
    %cst = arith.constant dense<0.000000e+00> : vector<16x512xf32>
    %6 = tpu.matmul %4, %5, %cst {dimension_numbers = #tpu.dot_dimension_numbers<[1], [0], [0], [1], [0, 0, 1, 1], [], []>} : vector<16x128xbf16>, vector<128x512xbf16>, vector<16x512xf32> -> vector<16x512xf32>
    %7 = vector.extract_strided_slice %2 {offsets = [1, 0], sizes = [16, 128], strides = [1, 1]} : vector<18x128xf32> to vector<16x128xf32>
    %8 = arith.truncf %7 : vector<16x128xf32> to vector<16x128xbf16>
    %c128 = arith.constant 128 : index
    %c0_4 = arith.constant 0 : index
    %9 = vector.load %arg2[%c128, %c0_4] : memref<384x512xbf16, #tpu.memory_space<vmem>>, vector<128x512xbf16>
    %cst_5 = arith.constant dense<0.000000e+00> : vector<16x512xf32>
    %10 = tpu.matmul %8, %9, %cst_5 {dimension_numbers = #tpu.dot_dimension_numbers<[1], [0], [0], [1], [0, 0, 1, 1], [], []>} : vector<16x128xbf16>, vector<128x512xbf16>, vector<16x512xf32> -> vector<16x512xf32>
    %11 = arith.addf %6, %10 : vector<16x512xf32>
    %12 = vector.extract_strided_slice %2 {offsets = [2, 0], sizes = [16, 128], strides = [1, 1]} : vector<18x128xf32> to vector<16x128xf32>
    %13 = arith.truncf %12 : vector<16x128xf32> to vector<16x128xbf16>
    %c256 = arith.constant 256 : index
    %c0_6 = arith.constant 0 : index
    %14 = vector.load %arg2[%c256, %c0_6] : memref<384x512xbf16, #tpu.memory_space<vmem>>, vector<128x512xbf16>
    %cst_7 = arith.constant dense<0.000000e+00> : vector<16x512xf32>
    %15 = tpu.matmul %13, %14, %cst_7 {dimension_numbers = #tpu.dot_dimension_numbers<[1], [0], [0], [1], [0, 0, 1, 1], [], []>} : vector<16x128xbf16>, vector<128x512xbf16>, vector<16x512xf32> -> vector<16x512xf32>
    %16 = arith.addf %11, %15 : vector<16x512xf32>
    %cst_8 = arith.constant 0.000000e+00 : f32
    %17 = vector.broadcast %cst_8 : f32 to vector<16x512xf32>
    %18 = arith.maximumf %16, %17 : vector<16x512xf32>
    %19 = vector.extract_strided_slice %18 {offsets = [0, 0], sizes = [8, 512], strides = [1, 1]} : vector<16x512xf32> to vector<8x512xf32>
    %20 = vector.extract_strided_slice %18 {offsets = [8, 0], sizes = [8, 512], strides = [1, 1]} : vector<16x512xf32> to vector<8x512xf32>
    %21 = arith.addf %19, %20 : vector<8x512xf32>
    %22 = arith.truncf %21 : vector<8x512xf32> to vector<8x512xbf16>
    %c0_9 = arith.constant 0 : index
    %c0_10 = arith.constant 0 : index
    %23 = vector.load %arg3[%c0_9, %c0_10] : memref<512x128xbf16, #tpu.memory_space<vmem>>, vector<512x128xbf16>
    %cst_11 = arith.constant dense<0.000000e+00> : vector<8x128xf32>
    %24 = tpu.matmul %22, %23, %cst_11 {dimension_numbers = #tpu.dot_dimension_numbers<[1], [0], [0], [1], [0, 0, 1, 1], [], []>} : vector<8x512xbf16>, vector<512x128xbf16>, vector<8x128xf32> -> vector<8x128xf32>
    %cst_12 = arith.constant dense<0.000000e+00> : vector<128xf32>
    %25 = vector.multi_reduction <add>, %24, %cst_12 [0] : vector<8x128xf32> to vector<128xf32>
    %26 = vector.shape_cast %25 : vector<128xf32> to vector<1x128xf32>
    %c0_13 = arith.constant 0 : index
    %c0_14 = arith.constant 0 : index
    %27 = vector.load %arg4[%c0_13, %c0_14] : memref<1x128xf32, #tpu.memory_space<vmem>>, vector<1x128xf32>
    %28 = arith.addf %26, %27 : vector<1x128xf32>
    %c0_15 = arith.constant 0 : index
    %c0_16 = arith.constant 0 : index
    %c0_17 = arith.constant 0 : index
    %29 = vector.load %arg5[%c0_15, %c0_16, %c0_17] : memref<1x1x128xf32, #tpu.memory_space<vmem>>, vector<1x1x128xf32>
    %30 = vector.shape_cast %29 : vector<1x1x128xf32> to vector<1x128xf32>
    %31 = vector.shape_cast %28 : vector<1x128xf32> to vector<1x1x128xf32>
    tpu.vector_store %arg5[%c0_15, %c0_16, %c0_17], %31 {strides = array<i32>} : memref<1x1x128xf32, #tpu.memory_space<vmem>>, vector<1x1x128xf32>,
    return
  }
  func.func @transform_0(%arg0: i32) -> (i32, i32, i32) {
    %c0_i32 = arith.constant 0 : i32
    %c0_i32_0 = arith.constant 0 : i32
    %c0_i32_1 = arith.constant 0 : i32
    return %arg0, %c0_i32, %c0_i32_0 : i32, i32, i32
  }
  func.func @transform_1(%arg0: i32) -> (i32, i32) {
    %c0_i32 = arith.constant 0 : i32
    %c0_i32_0 = arith.constant 0 : i32
    %c0_i32_1 = arith.constant 0 : i32
    return %c0_i32, %c0_i32_0 : i32, i32
  }
  func.func @transform_2(%arg0: i32) -> (i32, i32) {
    %c0_i32 = arith.constant 0 : i32
    %c0_i32_0 = arith.constant 0 : i32
    %c0_i32_1 = arith.constant 0 : i32
    return %c0_i32, %c0_i32_0 : i32, i32
  }
  func.func @transform_3(%arg0: i32) -> (i32, i32) {
    %c0_i32 = arith.constant 0 : i32
    %c0_i32_0 = arith.constant 0 : i32
    %c0_i32_1 = arith.constant 0 : i32
    return %c0_i32, %c0_i32_0 : i32, i32
  }
  func.func @transform_4(%arg0: i32) -> (i32, i32, i32) {
    %c0_i32 = arith.constant 0 : i32
    %c0_i32_0 = arith.constant 0 : i32
    %c0_i32_1 = arith.constant 0 : i32
    return %arg0, %c0_i32, %c0_i32_0 : i32, i32, i32
  }
}

</mosaic_0001>

<llo_original>
// kernel: tpu_custom_call.1
$region0: #{tpu_custom_call.1}
  #allocation0 [shape = 'u32[]', space=smem, size = 0x4, offset = 0x4, fixed_abs, tag = 'smem constant byte address 0x4 - core index']
  #allocation1 [shape = 'u32[144,128]{1,0:T(1,128)}', space=vmem, size = 0x12000, scoped, tag = 'internal scratch']
  %s0 = inlined_call_operand.vmem [shape: bf16[2,18,128], index: 0, kind: input, shape index: {}]
  %s1 = inlined_call_operand.hbm [shape: bf16[384,512], index: 1, kind: input, shape index: {}]
  %s2 = inlined_call_operand.hbm [shape: bf16[512,128], index: 2, kind: input, shape index: {}]
  %s3 = inlined_call_operand.vmem [shape: f32[1,128], index: 3, kind: input, shape index: {}]
  %s4 = inlined_call_operand.hbm [shape: f32[2,1,128], index: 4, kind: output, shape index: {}]
  %s5 = sld [smem:[#allocation0]]
  $region57: #{tpu_custom_call.1} parent=0
    _
  %s7 = ssub.s32 1, %s5
  %s8 = scalar_select 0, %s7, %s5
  $region1: #{tpu_custom_call.1} parent=0
    #allocation2 [shape = 'u8[393216]{0}', space=vmem, size = 0x60000, scoped, tag = 'input window, operand 1, single buffered']
    #allocation3 [shape = 's32[2]{0}', space=sflag, size = 0x8, scoped, tag = 'scoped memory for tpu_custom_call.1']
    #allocation4 [shape = 's32[2]{0}', space=sflag, size = 0x8, scoped, tag = 'scoped memory for tpu_custom_call.1']
    #allocation5 [shape = 'u8[131072]{0}', space=vmem, size = 0x20000, scoped, tag = 'input window, operand 2, single buffered']
    #allocation6 [shape = 's32[1]{0}', space=sflag, size = 0x4, scoped, tag = 'scoped memory for tpu_custom_call.1']
    #allocation7 [shape = 'u8[1024]{0}', space=vmem, size = 0x400, scoped, tag = 'output window, operand 0']
    %9 = vsyncpa [#allocation3], 0
    %10 = vsyncpa [#allocation6], 0
    %11 = vsyncpa [#allocation4], 0
    %s12 = scalar_lea.sflag [#allocation4], 1
    %13 = vsyncpa %s12, 0
    loop: start=0, step=1, limit=4
    $region2: #{tpu_custom_call.1} parent=1 // loop_pre_header
      _
    $region3: #{tpu_custom_call.1} parent=1 // loop_header
      %s15 = sphi 0, %s19
      %p16 = scmp.ge.s32.totalorder %s15, 4
      %s25 = sphi 0, %s27
      %s28 = sphi 0, %s25
      %s29 = sphi 0, %s28
      %s45 = sphi 0, %s29
      %s49 = sphi 0, %s49
      %s51 = sphi 0, %s49
      %s52 = sphi 0, %s51
      %s66 = sphi 0, %s52
      %s70 = sphi 0, %s70
      %s72 = sphi 0, %s70
      %s73 = sphi 0, %s72
      %s87 = sphi 0, %s73
      %s91 = sphi 0, %s91
      %s93 = sphi 0, %s91
      %s94 = sphi 0, %s93
      %s108 = sphi 0, %s94
      %s114 = sphi 0, %s116
      %s117 = sphi 0, %s114
      %s118 = sphi 0, %s117
      %s134 = sphi 0, %s118
    $region4: #{tpu_custom_call.1} parent=1 // loop_header_branch
      %18 = sbr.rel (%p16) target = $region8
    $region5: #{tpu_custom_call.1} parent=1 // loop_body
      %s20 = ssub.s32 %s15, 1
      %s21 = ssub.s32 %s15, 2
      %s22 = sadd.s32 %s15, 1
      %s23 = ssub.s32 %s15, %s22
      %p24 = scmp.eq.s32.totalorder %s23, 0
      %s26 = sadd.s32 %s25, 1
      %s27 = scalar_select %p24, %s25, %s26
      %p30 = pneg %p24
      %p31 = scmp.eq.s32.totalorder %s15, 1
      %p32 = por %p30, %p31
      %p33 = scmp.ne.s32.totalorder %s25, %s28
      %p34 = scmp.eq.s32.totalorder %s15, 0
      %p35 = por %p33, %p34
      %p36 = scmp.ne.s32.totalorder %s25, %s28
      %p37 = scmp.eq.s32.totalorder %s20, 1
      %p38 = por %p36, %p37
      %p39 = scmp.ne.s32.totalorder %s28, %s29
      %p40 = scmp.eq.s32.totalorder %s20, 0
      %p41 = por %p39, %p40
      %p42 = scmp.ne.s32.totalorder %s28, %s29
      %p43 = scmp.eq.s32.totalorder %s21, 1
      %p44 = por %p42, %p43
      %p46 = scmp.ne.s32.totalorder %s29, %s45
      %p47 = scmp.eq.s32.totalorder %s21, 0
      %p48 = por %p46, %p47
      %s50 = sadd.s32 %s49, 1
      %p53 = scmp.eq.s32.totalorder %s15, 1
      %p54 = scmp.ne.s32.totalorder %s49, %s51
      %p55 = scmp.eq.s32.totalorder %s15, 0
      %p56 = por %p54, %p55
      %p57 = scmp.ne.s32.totalorder %s49, %s51
      %p58 = scmp.eq.s32.totalorder %s20, 1
      %p59 = por %p57, %p58
      %p60 = scmp.ne.s32.totalorder %s51, %s52
      %p61 = scmp.eq.s32.totalorder %s20, 0
      %p62 = por %p60, %p61
      %p63 = scmp.ne.s32.totalorder %s51, %s52
      %p64 = scmp.eq.s32.totalorder %s21, 1
      %p65 = por %p63, %p64
      %p67 = scmp.ne.s32.totalorder %s52, %s66
      %p68 = scmp.eq.s32.totalorder %s21, 0
      %p69 = por %p67, %p68
      %s71 = sadd.s32 %s70, 1
      %p74 = scmp.eq.s32.totalorder %s15, 1
      %p75 = scmp.ne.s32.totalorder %s70, %s72
      %p76 = scmp.eq.s32.totalorder %s15, 0
      %p77 = por %p75, %p76
      %p78 = scmp.ne.s32.totalorder %s70, %s72
      %p79 = scmp.eq.s32.totalorder %s20, 1
      %p80 = por %p78, %p79
      %p81 = scmp.ne.s32.totalorder %s72, %s73
      %p82 = scmp.eq.s32.totalorder %s20, 0
      %p83 = por %p81, %p82
      %p84 = scmp.ne.s32.totalorder %s72, %s73
      %p85 = scmp.eq.s32.totalorder %s21, 1
      %p86 = por %p84, %p85
      %p88 = scmp.ne.s32.totalorder %s73, %s87
      %p89 = scmp.eq.s32.totalorder %s21, 0
      %p90 = por %p88, %p89
      %s92 = sadd.s32 %s91, 1
      %p95 = scmp.eq.s32.totalorder %s15, 1
      %p96 = scmp.ne.s32.totalorder %s91, %s93
      %p97 = scmp.eq.s32.totalorder %s15, 0
      %p98 = por %p96, %p97
      %p99 = scmp.ne.s32.totalorder %s91, %s93
      %p100 = scmp.eq.s32.totalorder %s20, 1
      %p101 = por %p99, %p100
      %p102 = scmp.ne.s32.totalorder %s93, %s94
      %p103 = scmp.eq.s32.totalorder %s20, 0
      %p104 = por %p102, %p103
      %p105 = scmp.ne.s32.totalorder %s93, %s94
      %p106 = scmp.eq.s32.totalorder %s21, 1
      %p107 = por %p105, %p106
      %p109 = scmp.ne.s32.totalorder %s94, %s108
      %p110 = scmp.eq.s32.totalorder %s21, 0
      %p111 = por %p109, %p110
      %s112 = ssub.s32 %s15, %s22
      %p113 = scmp.eq.s32.totalorder %s112, 0
      %s115 = sadd.s32 %s114, 1
      %s116 = scalar_select %p113, %s114, %s115
      %p119 = pneg %p113
      %p120 = scmp.eq.s32.totalorder %s15, 1
      %p121 = por %p119, %p120
      %p122 = scmp.ne.s32.totalorder %s114, %s117
      %p123 = scmp.eq.s32.totalorder %s15, 0
      %p124 = por %p122, %p123
      %p125 = scmp.ne.s32.totalorder %s114, %s117
      %p126 = scmp.eq.s32.totalorder %s20, 1
      %p127 = por %p125, %p126
      %p128 = scmp.ne.s32.totalorder %s117, %s118
      %p129 = scmp.eq.s32.totalorder %s20, 0
      %p130 = por %p128, %p129
      %p131 = scmp.ne.s32.totalorder %s117, %s118
      %p132 = scmp.eq.s32.totalorder %s21, 1
      %p133 = por %p131, %p132
      %p135 = scmp.ne.s32.totalorder %s118, %s134
      %p136 = scmp.eq.s32.totalorder %s21, 0
      %p137 = por %p135, %p136
      %p138 = scmp.le.s32.totalorder 1, %s15
      %p139 = scmp.lt.s32.totalorder %s15, 3
      %p140 = pnand %p138, %p139
      %p141 = pneg %p140
      // Predicated region
      $region9: #{tpu_custom_call.1} parent=5 // pred_check
        _
      $region10: #{tpu_custom_call.1} parent=5 // pred_check_branch
        %143 = sbr.rel (%p140) target = $region12
      $region11: #{tpu_custom_call.1} parent=5 // pred_region
        %s144 = ssub.s32 %s15, 1
        // Predicated region
        $region13: #{tpu_custom_call.1} parent=11 // pred_check
          %p145 = pneg %p62
        $region14: #{tpu_custom_call.1} parent=11 // pred_check_branch
          %147 = sbr.rel (%p145) target = $region16
        $region15: #{tpu_custom_call.1} parent=11 // pred_region
          %s149 = ssub.s32 12288, 12288
          %150 = vsyncadd [#allocation3], %s149
          %s151 = sshll.u32 [#allocation2], 4
          %s152 = int_to_ptr.vmem [resolvable:$true] %s151
          %157 = dma.hbm_to_vmem [thread:$0]  %s1, 12288, %s152, [#allocation3], 256, 256, 16
        $region16: #{tpu_custom_call.1} parent=11 // pred_fallthru
          _
        // Predicated region
        $region17: #{tpu_custom_call.1} parent=11 // pred_check
          %p158 = pneg %p83
        $region18: #{tpu_custom_call.1} parent=11 // pred_check_branch
          %160 = sbr.rel (%p158) target = $region20
        $region19: #{tpu_custom_call.1} parent=11 // pred_region
          %s162 = ssub.s32 4096, 4096
          %163 = vsyncadd [#allocation6], %s162
          %s164 = sshll.u32 [#allocation5], 4
          %s165 = int_to_ptr.vmem [resolvable:$true] %s164
          %170 = dma.hbm_to_vmem [thread:$0]  %s2, 4096, %s165, [#allocation6], 64, 64, 4
        $region20: #{tpu_custom_call.1} parent=11 // pred_fallthru
          _
        // Predicated region
        $region21: #{tpu_custom_call.1} parent=11 // pred_check
          %p171 = pneg %p104
        $region22: #{tpu_custom_call.1} parent=11 // pred_check_branch
          %173 = sbr.rel (%p171) target = $region24
        $region23: #{tpu_custom_call.1} parent=11 // pred_region
          _
        $region24: #{tpu_custom_call.1} parent=11 // pred_fallthru
          _
      $region12: #{tpu_custom_call.1} parent=5 // pred_fallthru
        _
      %p174 = scmp.lt.s32.totalorder %s15, 2
      // Predicated region
      $region25: #{tpu_custom_call.1} parent=5 // pred_check
        %p175 = pneg %p174
      $region26: #{tpu_custom_call.1} parent=5 // pred_check_branch
        %177 = sbr.rel (%p175) target = $region28
      $region27: #{tpu_custom_call.1} parent=5 // pred_region
        // Predicated region
        $region29: #{tpu_custom_call.1} parent=27 // pred_check
          %p178 = pneg %p35
        $region30: #{tpu_custom_call.1} parent=27 // pred_check_branch
          %180 = sbr.rel (%p178) target = $region32
        $region31: #{tpu_custom_call.1} parent=27 // pred_region
          %p181 = scmp.lt.s32.totalorder %s15, 1
          %s182 = scalar_select %p181, %s15, 1
          %s183 = smul.addr %s182, 3
          %s184 = smul.addr %s183, 4
          %s185 = scalar_lea.vmem %s0, %s184
        $region32: #{tpu_custom_call.1} parent=27 // pred_fallthru
          _
      $region28: #{tpu_custom_call.1} parent=5 // pred_fallthru
        _
      %p186 = scmp.le.s32.totalorder 1, %s15
      %p187 = scmp.lt.s32.totalorder %s15, 3
      %p188 = pnand %p186, %p187
      %p189 = pneg %p188
      // Predicated region
      $region33: #{tpu_custom_call.1} parent=5 // pred_check
        _
      $region34: #{tpu_custom_call.1} parent=5 // pred_check_branch
        %191 = sbr.rel (%p188) target = $region36
      $region35: #{tpu_custom_call.1} parent=5 // pred_region
        %s192 = ssub.s32 %s15, 1
        // Predicated region
        $region37: #{tpu_custom_call.1} parent=35 // pred_check
          %p193 = pneg %p62
        $region38: #{tpu_custom_call.1} parent=35 // pred_check_branch
          %195 = sbr.rel (%p193) target = $region40
        $region39: #{tpu_custom_call.1} parent=35 // pred_region
          %196 = dma.done [#allocation3], 12288
        $region40: #{tpu_custom_call.1} parent=35 // pred_fallthru
          _
        // Predicated region
        $region41: #{tpu_custom_call.1} parent=35 // pred_check
          %p197 = pneg %p83
        $region42: #{tpu_custom_call.1} parent=35 // pred_check_branch
          %199 = sbr.rel (%p197) target = $region44
        $region43: #{tpu_custom_call.1} parent=35 // pred_region
          %200 = dma.done [#allocation6], 4096
        $region44: #{tpu_custom_call.1} parent=35 // pred_fallthru
          _
        %p201 = scmp.lt.s32.totalorder %s20, 1
        %s202 = scalar_select %p201, %s20, 1
        %s203 = smul.addr %s202, 3
        %s204 = smul.addr %s203, 4
        %s205 = scalar_lea.vmem %s0, %s204
        %p206 = pneg %p41
        %p207 = pneg %p38
        %p208 = pneg %p62
        %p209 = pneg %p59
        %p210 = pneg %p83
        %p211 = pneg %p80
        %p212 = pneg %p104
        %p213 = pneg %p101
        %p214 = pneg %p130
        %p215 = pneg %p127
        %s216 = sand.u32 %s117, 1
        %s217 = scalar_lea.sflag [#allocation4], %s216
        %s218 = sand.u32 %s117, 1
        %s219 = scalar_lea.vmem [#allocation7], %s218
        %p220 = scmp.lt.s32.totalorder %s20, 1
        %s221 = scalar_select %p220, %s20, 1
        %s222 = smul.addr %s221, 3
        %s223 = smul.addr %s222, 4
        %s224 = scalar_lea.vmem %s0, %s223
        %v226 = vld [vmem:[%s224] sm:$0xf]
        %v227 = vld [vmem:[%s224 + $0x4] sm:$0xf]
        %v228 = vld [vmem:[%s224 + $0x8] sm:$0x1]
        %v229 = vunpack.c.l.bf16 %v226
        %v230 = vunpack.c.l.bf16 %v227
        %v231 = vunpack.c.l.bf16 %v228
        %v232 = vpack.c.bf16 %v230, %v229
        %v233 = vld [vmem:[#allocation2] sm:$0xff]
        %v234 = vld [vmem:[#allocation2 + $0x8] sm:$0xff]
        %v235 = vld [vmem:[#allocation2 + $0x10] sm:$0xff]
        %v236 = vld [vmem:[#allocation2 + $0x18] sm:$0xff]
        %v237 = vld [vmem:[#allocation2 + $0x20] sm:$0xff]
        %v238 = vld [vmem:[#allocation2 + $0x28] sm:$0xff]
        %v239 = vld [vmem:[#allocation2 + $0x30] sm:$0xff]
        %v240 = vld [vmem:[#allocation2 + $0x38] sm:$0xff]
        %v241 = vld [vmem:[#allocation2 + $0x40] sm:$0xff]
        %v242 = vld [vmem:[#allocation2 + $0x48] sm:$0xff]
        %v243 = vld [vmem:[#allocation2 + $0x50] sm:$0xff]
        %v244 = vld [vmem:[#allocation2 + $0x58] sm:$0xff]
        %v245 = vld [vmem:[#allocation2 + $0x60] sm:$0xff]
        %v246 = vld [vmem:[#allocation2 + $0x68] sm:$0xff]
        %v247 = vld [vmem:[#allocation2 + $0x70] sm:$0xff]
        %v248 = vld [vmem:[#allocation2 + $0x78] sm:$0xff]
        %v249 = vld [vmem:[#allocation2 + $0x80] sm:$0xff]
        %v250 = vld [vmem:[#allocation2 + $0x88] sm:$0xff]
        %v251 = vld [vmem:[#allocation2 + $0x90] sm:$0xff]
        %v252 = vld [vmem:[#allocation2 + $0x98] sm:$0xff]
        %v253 = vld [vmem:[#allocation2 + $0xa0] sm:$0xff]
        %v254 = vld [vmem:[#allocation2 + $0xa8] sm:$0xff]
        %v255 = vld [vmem:[#allocation2 + $0xb0] sm:$0xff]
        %v256 = vld [vmem:[#allocation2 + $0xb8] sm:$0xff]
        %v257 = vld [vmem:[#allocation2 + $0xc0] sm:$0xff]
        %v258 = vld [vmem:[#allocation2 + $0xc8] sm:$0xff]
        %v259 = vld [vmem:[#allocation2 + $0xd0] sm:$0xff]
        %v260 = vld [vmem:[#allocation2 + $0xd8] sm:$0xff]
        %v261 = vld [vmem:[#allocation2 + $0xe0] sm:$0xff]
        %v262 = vld [vmem:[#allocation2 + $0xe8] sm:$0xff]
        %v263 = vld [vmem:[#allocation2 + $0xf0] sm:$0xff]
        %v264 = vld [vmem:[#allocation2 + $0xf8] sm:$0xff]
        %v265 = vpack.c.bf16 %v231, %v231
        %v266 = vld [vmem:[#allocation2 + $0x100] sm:$0xff]
        %v267 = vld [vmem:[#allocation2 + $0x108] sm:$0xff]
        %v268 = vld [vmem:[#allocation2 + $0x110] sm:$0xff]
        %v269 = vld [vmem:[#allocation2 + $0x118] sm:$0xff]
        %v270 = vld [vmem:[#allocation2 + $0x120] sm:$0xff]
        %v271 = vld [vmem:[#allocation2 + $0x128] sm:$0xff]
        %v272 = vld [vmem:[#allocation2 + $0x130] sm:$0xff]
        %v273 = vld [vmem:[#allocation2 + $0x138] sm:$0xff]
        %v274 = vld [vmem:[#allocation2 + $0x140] sm:$0xff]
        %v275 = vld [vmem:[#allocation2 + $0x148] sm:$0xff]
        %v276 = vld [vmem:[#allocation2 + $0x150] sm:$0xff]
        %v277 = vld [vmem:[#allocation2 + $0x158] sm:$0xff]
        %v278 = vld [vmem:[#allocation2 + $0x160] sm:$0xff]
        %v279 = vld [vmem:[#allocation2 + $0x168] sm:$0xff]
        %v280 = vld [vmem:[#allocation2 + $0x170] sm:$0xff]
        %v281 = vld [vmem:[#allocation2 + $0x178] sm:$0xff]
        %v282 = vld [vmem:[#allocation2 + $0x180] sm:$0xff]
        %v283 = vld [vmem:[#allocation2 + $0x188] sm:$0xff]
        %v284 = vld [vmem:[#allocation2 + $0x190] sm:$0xff]
        %v285 = vld [vmem:[#allocation2 + $0x198] sm:$0xff]
        %v286 = vld [vmem:[#allocation2 + $0x1a0] sm:$0xff]
        %v287 = vld [vmem:[#allocation2 + $0x1a8] sm:$0xff]
        %v288 = vld [vmem:[#allocation2 + $0x1b0] sm:$0xff]
        %v289 = vld [vmem:[#allocation2 + $0x1b8] sm:$0xff]
        %v290 = vld [vmem:[#allocation2 + $0x1c0] sm:$0xff]
        %v291 = vld [vmem:[#allocation2 + $0x1c8] sm:$0xff]
        %v292 = vld [vmem:[#allocation2 + $0x1d0] sm:$0xff]
        %v293 = vld [vmem:[#allocation2 + $0x1d8] sm:$0xff]
        %v294 = vld [vmem:[#allocation2 + $0x1e0] sm:$0xff]
        %v295 = vld [vmem:[#allocation2 + $0x1e8] sm:$0xff]
        %v296 = vld [vmem:[#allocation2 + $0x1f0] sm:$0xff]
        %v297 = vld [vmem:[#allocation2 + $0x1f8] sm:$0xff]
        %vm298 = vsmask.f32 7424
        %v300 = vshrl.u32 %v232, 16
        %v302 = vshll.u32 %v232, 16
        %v304 = vrot.slane %v302, 1
        %v305 = vor.u32 %v300, %v304
        %v307 = vshll.u32 %v265, 16
        %v309 = vrot.slane %v307, 1
        %v310 = vsel %vm298, %v305, %v309
        %v344 = vunpack.c.l.b16 %v266
        %v345 = vunpack.c.h.b16 %v266
        %v346 = vunpack.c.l.b16 %v267
        %v347 = vunpack.c.h.b16 %v267
        %v348 = vunpack.c.l.b16 %v268
        %v349 = vunpack.c.h.b16 %v268
        %v350 = vunpack.c.l.b16 %v269
        %v351 = vunpack.c.h.b16 %v269
        %v352 = vunpack.c.l.b16 %v270
        %v353 = vunpack.c.h.b16 %v270
        %v354 = vunpack.c.l.b16 %v271
        %v355 = vunpack.c.h.b16 %v271
        %v356 = vunpack.c.l.b16 %v272
        %v357 = vunpack.c.h.b16 %v272
        %v358 = vunpack.c.l.b16 %v273
        %v359 = vunpack.c.h.b16 %v273
        %v360 = vunpack.c.l.b16 %v274
        %v361 = vunpack.c.h.b16 %v274
        %v362 = vunpack.c.l.b16 %v275
        %v363 = vunpack.c.h.b16 %v275
        %v364 = vunpack.c.l.b16 %v276
        %v365 = vunpack.c.h.b16 %v276
        %v366 = vunpack.c.l.b16 %v277
        %v367 = vunpack.c.h.b16 %v277
        %v368 = vunpack.c.l.b16 %v278
        %v369 = vunpack.c.h.b16 %v278
        %v370 = vunpack.c.l.b16 %v279
        %v371 = vunpack.c.h.b16 %v279
        %v372 = vunpack.c.l.b16 %v280
        %v373 = vunpack.c.h.b16 %v280
        %v374 = vunpack.c.l.b16 %v281
        %v375 = vunpack.c.h.b16 %v281
        %v376 = vunpack.c.l.b16 %v282
        %v377 = vunpack.c.h.b16 %v282
        %v378 = vunpack.c.l.b16 %v283
        %v379 = vunpack.c.h.b16 %v283
        %v380 = vunpack.c.l.b16 %v284
        %v381 = vunpack.c.h.b16 %v284
        %v382 = vunpack.c.l.b16 %v285
        %v383 = vunpack.c.h.b16 %v285
        %v384 = vunpack.c.l.b16 %v286
        %v385 = vunpack.c.h.b16 %v286
        %v386 = vunpack.c.l.b16 %v287
        %v387 = vunpack.c.h.b16 %v287
        %v388 = vunpack.c.l.b16 %v288
        %v389 = vunpack.c.h.b16 %v288
        %v390 = vunpack.c.l.b16 %v289
        %v391 = vunpack.c.h.b16 %v289
        %v392 = vunpack.c.l.b16 %v290
        %v393 = vunpack.c.h.b16 %v290
        %v394 = vunpack.c.l.b16 %v291
        %v395 = vunpack.c.h.b16 %v291
        %v396 = vunpack.c.l.b16 %v292
        %v397 = vunpack.c.h.b16 %v292
        %v398 = vunpack.c.l.b16 %v293
        %v399 = vunpack.c.h.b16 %v293
        %v400 = vunpack.c.l.b16 %v294
        %v401 = vunpack.c.h.b16 %v294
        %v402 = vunpack.c.l.b16 %v295
        %v403 = vunpack.c.h.b16 %v295
        %v404 = vunpack.c.l.b16 %v296
        %v405 = vunpack.c.h.b16 %v296
        %v406 = vunpack.c.l.b16 %v297
        %v407 = vunpack.c.h.b16 %v297
        %v408 = vpack.c.b16 %v348, %v344
        %v409 = vpack.c.b16 %v349, %v345
        %v410 = vpack.c.b16 %v350, %v346
        %v411 = vpack.c.b16 %v351, %v347
        %v412 = vpack.c.b16 %v356, %v352
        %v413 = vpack.c.b16 %v357, %v353
        %v414 = vpack.c.b16 %v358, %v354
        %v415 = vpack.c.b16 %v359, %v355
        %v416 = vpack.c.b16 %v364, %v360
        %v417 = vpack.c.b16 %v365, %v361
        %v418 = vpack.c.b16 %v366, %v362
        %v419 = vpack.c.b16 %v367, %v363
        %v420 = vpack.c.b16 %v372, %v368
        %v421 = vpack.c.b16 %v373, %v369
        %v422 = vpack.c.b16 %v374, %v370
        %v423 = vpack.c.b16 %v375, %v371
        %v424 = vpack.c.b16 %v380, %v376
        %v425 = vpack.c.b16 %v381, %v377
        %v426 = vpack.c.b16 %v382, %v378
        %v427 = vpack.c.b16 %v383, %v379
        %v428 = vpack.c.b16 %v388, %v384
        %v429 = vpack.c.b16 %v389, %v385
        %v430 = vpack.c.b16 %v390, %v386
        %v431 = vpack.c.b16 %v391, %v387
        %v432 = vpack.c.b16 %v396, %v392
        %v433 = vpack.c.b16 %v397, %v393
        %v434 = vpack.c.b16 %v398, %v394
        %v435 = vpack.c.b16 %v399, %v395
        %v436 = vpack.c.b16 %v404, %v400
        %v437 = vpack.c.b16 %v405, %v401
        %v438 = vpack.c.b16 %v406, %v402
        %v439 = vpack.c.b16 %v407, %v403
        %472 = vmatprep.subr.bf16.mxu0 %v409
        %473 = vmatpush1.bf16.msra.mxu0 %v408
        %474 = vmatprep.subr.bf16.mxu0 %v413
        %475 = vmatpush1.bf16.msra.mxu0 %v412
        %476 = vmatprep.subr.bf16.mxu0 %v417
        %477 = vmatpush1.bf16.msra.mxu0 %v416
        %478 = vmatprep.subr.bf16.mxu0 %v421
        %479 = vmatpush1.bf16.msra.mxu0 %v420
        %480 = vmatprep.subr.bf16.mxu0 %v425
        %481 = vmatpush1.bf16.msra.mxu0 %v424
        %482 = vmatprep.subr.bf16.mxu0 %v429
        %483 = vmatpush1.bf16.msra.mxu0 %v428
        %484 = vmatprep.subr.bf16.mxu0 %v433
        %485 = vmatpush1.bf16.msra.mxu0 %v432
        %486 = vmatprep.subr.bf16.mxu0 %v437
        %487 = vmatpush1.bf16.msra.mxu0 %v436
        %488 = vmatprep.subr.bf16.mxu0 0
        %489 = vmatpush1.bf16.msra.mxu0 0
        %490 = vmatprep.subr.bf16.mxu0 0
        %491 = vmatpush1.bf16.msra.mxu0 0
        %492 = vmatprep.subr.bf16.mxu0 0
        %493 = vmatpush1.bf16.msra.mxu0 0
        %494 = vmatprep.subr.bf16.mxu0 0
        %495 = vmatpush1.bf16.msra.mxu0 0
        %496 = vmatprep.subr.bf16.mxu0 0
        %497 = vmatpush1.bf16.msra.mxu0 0
        %498 = vmatprep.subr.bf16.mxu0 0
        %499 = vmatpush1.bf16.msra.mxu0 0
        %500 = vmatprep.subr.bf16.mxu0 0
        %501 = vmatpush1.bf16.msra.mxu0 0
        %502 = vmatprep.subr.bf16.mxu0 0
        %503 = vmatpush1.bf16.msra.mxu0 0
        %504 = vmatprep.mubr.bf16.mxu0 0
        %505 = vmatmul.mubr.bf16.gmra.mrb[0].mxu0 %v310
        %v506 = vpop.f32.mrb[0].mxu0
        %v507 = vadd.f32 0.0, %v506
        %v508 = vpop.f32.mrb[0].mxu0
        %v509 = vadd.f32 0.0, %v508
        %v510 = vpop.f32.mrb[0].mxu0
        %v511 = vadd.f32 0.0, %v510
        %v512 = vpop.f32.mrb[0].mxu0
        %v513 = vadd.f32 0.0, %v512
        %514 = vdwg.mxu0
        %515 = vmatprep.subr.bf16.mxu0 %v411
        %516 = vmatpush1.bf16.msra.mxu0 %v410
        %517 = vmatprep.subr.bf16.mxu0 %v415
        %518 = vmatpush1.bf16.msra.mxu0 %v414
        %519 = vmatprep.subr.bf16.mxu0 %v419
        %520 = vmatpush1.bf16.msra.mxu0 %v418
        %521 = vmatprep.subr.bf16.mxu0 %v423
        %522 = vmatpush1.bf16.msra.mxu0 %v422
        %523 = vmatprep.subr.bf16.mxu0 %v427
        %524 = vmatpush1.bf16.msra.mxu0 %v426
        %525 = vmatprep.subr.bf16.mxu0 %v431
        %526 = vmatpush1.bf16.msra.mxu0 %v430
        %527 = vmatprep.subr.bf16.mxu0 %v435
        %528 = vmatpush1.bf16.msra.mxu0 %v434
        %529 = vmatprep.subr.bf16.mxu0 %v439
        %530 = vmatpush1.bf16.msra.mxu0 %v438
        %531 = vmatprep.subr.bf16.mxu0 0
        %532 = vmatpush1.bf16.msra.mxu0 0
        %533 = vmatprep.subr.bf16.mxu0 0
        %534 = vmatpush1.bf16.msra.mxu0 0
        %535 = vmatprep.subr.bf16.mxu0 0
        %536 = vmatpush1.bf16.msra.mxu0 0
        %537 = vmatprep.subr.bf16.mxu0 0
        %538 = vmatpush1.bf16.msra.mxu0 0
        %539 = vmatprep.subr.bf16.mxu0 0
        %540 = vmatpush1.bf16.msra.mxu0 0
        %541 = vmatprep.subr.bf16.mxu0 0
        %542 = vmatpush1.bf16.msra.mxu0 0
        %543 = vmatprep.subr.bf16.mxu0 0
        %544 = vmatpush1.bf16.msra.mxu0 0
        %545 = vmatprep.subr.bf16.mxu0 0
        %546 = vmatpush1.bf16.msra.mxu0 0
        %547 = vmatprep.mubr.bf16.mxu0 0
        %548 = vmatmul.mubr.bf16.gmra.mrb[0].mxu0 %v310
        %v549 = vpop.f32.mrb[0].mxu0
        %v550 = vadd.f32 0.0, %v549
        %v551 = vpop.f32.mrb[0].mxu0
        %v552 = vadd.f32 0.0, %v551
        %v553 = vpop.f32.mrb[0].mxu0
        %v554 = vadd.f32 0.0, %v553
        %v555 = vpop.f32.mrb[0].mxu0
        %v556 = vadd.f32 0.0, %v555
        %557 = vdwg.mxu0
        %v590 = vunpack.c.l.b16 %v233
        %v591 = vunpack.c.h.b16 %v233
        %v592 = vunpack.c.l.b16 %v234
        %v593 = vunpack.c.h.b16 %v234
        %v594 = vunpack.c.l.b16 %v235
        %v595 = vunpack.c.h.b16 %v235
        %v596 = vunpack.c.l.b16 %v236
        %v597 = vunpack.c.h.b16 %v236
        %v598 = vunpack.c.l.b16 %v237
        %v599 = vunpack.c.h.b16 %v237
        %v600 = vunpack.c.l.b16 %v238
        %v601 = vunpack.c.h.b16 %v238
        %v602 = vunpack.c.l.b16 %v239
        %v603 = vunpack.c.h.b16 %v239
        %v604 = vunpack.c.l.b16 %v240
        %v605 = vunpack.c.h.b16 %v240
        %v606 = vunpack.c.l.b16 %v241
        %v607 = vunpack.c.h.b16 %v241
        %v608 = vunpack.c.l.b16 %v242
        %v609 = vunpack.c.h.b16 %v242
        %v610 = vunpack.c.l.b16 %v243
        %v611 = vunpack.c.h.b16 %v243
        %v612 = vunpack.c.l.b16 %v244
        %v613 = vunpack.c.h.b16 %v244
        %v614 = vunpack.c.l.b16 %v245
        %v615 = vunpack.c.h.b16 %v245
        %v616 = vunpack.c.l.b16 %v246
        %v617 = vunpack.c.h.b16 %v246
        %v618 = vunpack.c.l.b16 %v247
        %v619 = vunpack.c.h.b16 %v247
        %v620 = vunpack.c.l.b16 %v248
        %v621 = vunpack.c.h.b16 %v248
        %v622 = vunpack.c.l.b16 %v249
        %v623 = vunpack.c.h.b16 %v249
        %v624 = vunpack.c.l.b16 %v250
        %v625 = vunpack.c.h.b16 %v250
        %v626 = vunpack.c.l.b16 %v251
        %v627 = vunpack.c.h.b16 %v251
        %v628 = vunpack.c.l.b16 %v252
        %v629 = vunpack.c.h.b16 %v252
        %v630 = vunpack.c.l.b16 %v253
        %v631 = vunpack.c.h.b16 %v253
        %v632 = vunpack.c.l.b16 %v254
        %v633 = vunpack.c.h.b16 %v254
        %v634 = vunpack.c.l.b16 %v255
        %v635 = vunpack.c.h.b16 %v255
        %v636 = vunpack.c.l.b16 %v256
        %v637 = vunpack.c.h.b16 %v256
        %v638 = vunpack.c.l.b16 %v257
        %v639 = vunpack.c.h.b16 %v257
        %v640 = vunpack.c.l.b16 %v258
        %v641 = vunpack.c.h.b16 %v258
        %v642 = vunpack.c.l.b16 %v259
        %v643 = vunpack.c.h.b16 %v259
        %v644 = vunpack.c.l.b16 %v260
        %v645 = vunpack.c.h.b16 %v260
        %v646 = vunpack.c.l.b16 %v261
        %v647 = vunpack.c.h.b16 %v261
        %v648 = vunpack.c.l.b16 %v262
        %v649 = vunpack.c.h.b16 %v262
        %v650 = vunpack.c.l.b16 %v263
        %v651 = vunpack.c.h.b16 %v263
        %v652 = vunpack.c.l.b16 %v264
        %v653 = vunpack.c.h.b16 %v264
        %v654 = vpack.c.b16 %v594, %v590
        %v655 = vpack.c.b16 %v595, %v591
        %v656 = vpack.c.b16 %v596, %v592
        %v657 = vpack.c.b16 %v597, %v593
        %v658 = vpack.c.b16 %v602, %v598
        %v659 = vpack.c.b16 %v603, %v599
        %v660 = vpack.c.b16 %v604, %v600
        %v661 = vpack.c.b16 %v605, %v601
        %v662 = vpack.c.b16 %v610, %v606
        %v663 = vpack.c.b16 %v611, %v607
        %v664 = vpack.c.b16 %v612, %v608
        %v665 = vpack.c.b16 %v613, %v609
        %v666 = vpack.c.b16 %v618, %v614
        %v667 = vpack.c.b16 %v619, %v615
        %v668 = vpack.c.b16 %v620, %v616
        %v669 = vpack.c.b16 %v621, %v617
        %v670 = vpack.c.b16 %v626, %v622
        %v671 = vpack.c.b16 %v627, %v623
        %v672 = vpack.c.b16 %v628, %v624
        %v673 = vpack.c.b16 %v629, %v625
        %v674 = vpack.c.b16 %v634, %v630
        %v675 = vpack.c.b16 %v635, %v631
        %v676 = vpack.c.b16 %v636, %v632
        %v677 = vpack.c.b16 %v637, %v633
        %v678 = vpack.c.b16 %v642, %v638
        %v679 = vpack.c.b16 %v643, %v639
        %v680 = vpack.c.b16 %v644, %v640
        %v681 = vpack.c.b16 %v645, %v641
        %v682 = vpack.c.b16 %v650, %v646
        %v683 = vpack.c.b16 %v651, %v647
        %v684 = vpack.c.b16 %v652, %v648
        %v685 = vpack.c.b16 %v653, %v649
        %718 = vmatprep.subr.bf16.mxu0 %v655
        %719 = vmatpush1.bf16.msra.mxu0 %v654
        %720 = vmatprep.subr.bf16.mxu0 %v659
        %721 = vmatpush1.bf16.msra.mxu0 %v658
        %722 = vmatprep.subr.bf16.mxu0 %v663
        %723 = vmatpush1.bf16.msra.mxu0 %v662
        %724 = vmatprep.subr.bf16.mxu0 %v667
        %725 = vmatpush1.bf16.msra.mxu0 %v666
        %726 = vmatprep.subr.bf16.mxu0 %v671
        %727 = vmatpush1.bf16.msra.mxu0 %v670
        %728 = vmatprep.subr.bf16.mxu0 %v675
        %729 = vmatpush1.bf16.msra.mxu0 %v674
        %730 = vmatprep.subr.bf16.mxu0 %v679
        %731 = vmatpush1.bf16.msra.mxu0 %v678
        %732 = vmatprep.subr.bf16.mxu0 %v683
        %733 = vmatpush1.bf16.msra.mxu0 %v682
        %734 = vmatprep.subr.bf16.mxu0 0
        %735 = vmatpush1.bf16.msra.mxu0 0
        %736 = vmatprep.subr.bf16.mxu0 0
        %737 = vmatpush1.bf16.msra.mxu0 0
        %738 = vmatprep.subr.bf16.mxu0 0
        %739 = vmatpush1.bf16.msra.mxu0 0
        %740 = vmatprep.subr.bf16.mxu0 0
        %741 = vmatpush1.bf16.msra.mxu0 0
        %742 = vmatprep.subr.bf16.mxu0 0
        %743 = vmatpush1.bf16.msra.mxu0 0
        %744 = vmatprep.subr.bf16.mxu0 0
        %745 = vmatpush1.bf16.msra.mxu0 0
        %746 = vmatprep.subr.bf16.mxu0 0
        %747 = vmatpush1.bf16.msra.mxu0 0
        %748 = vmatprep.subr.bf16.mxu0 0
        %749 = vmatpush1.bf16.msra.mxu0 0
        %750 = vmatprep.mubr.bf16.mxu0 0
        %751 = vmatmul.mubr.bf16.gmra.mrb[0].mxu0 %v232
        %v752 = vpop.f32.mrb[0].mxu0
        %v753 = vadd.f32 %v507, %v752
        %v754 = vpop.f32.mrb[0].mxu0
        %v755 = vadd.f32 %v509, %v754
        %v756 = vpop.f32.mrb[0].mxu0
        %v757 = vadd.f32 %v511, %v756
        %v758 = vpop.f32.mrb[0].mxu0
        %v759 = vadd.f32 %v513, %v758
        %760 = vdwg.mxu0
        %761 = vmatprep.subr.bf16.mxu0 %v657
        %762 = vmatpush1.bf16.msra.mxu0 %v656
        %763 = vmatprep.subr.bf16.mxu0 %v661
        %764 = vmatpush1.bf16.msra.mxu0 %v660
        %765 = vmatprep.subr.bf16.mxu0 %v665
        %766 = vmatpush1.bf16.msra.mxu0 %v664
        %767 = vmatprep.subr.bf16.mxu0 %v669
        %768 = vmatpush1.bf16.msra.mxu0 %v668
        %769 = vmatprep.subr.bf16.mxu0 %v673
        %770 = vmatpush1.bf16.msra.mxu0 %v672
        %771 = vmatprep.subr.bf16.mxu0 %v677
        %772 = vmatpush1.bf16.msra.mxu0 %v676
        %773 = vmatprep.subr.bf16.mxu0 %v681
        %774 = vmatpush1.bf16.msra.mxu0 %v680
        %775 = vmatprep.subr.bf16.mxu0 %v685
        %776 = vmatpush1.bf16.msra.mxu0 %v684
        %777 = vmatprep.subr.bf16.mxu0 0
        %778 = vmatpush1.bf16.msra.mxu0 0
        %779 = vmatprep.subr.bf16.mxu0 0
        %780 = vmatpush1.bf16.msra.mxu0 0
        %781 = vmatprep.subr.bf16.mxu0 0
        %782 = vmatpush1.bf16.msra.mxu0 0
        %783 = vmatprep.subr.bf16.mxu0 0
        %784 = vmatpush1.bf16.msra.mxu0 0
        %785 = vmatprep.subr.bf16.mxu0 0
        %786 = vmatpush1.bf16.msra.mxu0 0
        %787 = vmatprep.subr.bf16.mxu0 0
        %788 = vmatpush1.bf16.msra.mxu0 0
        %789 = vmatprep.subr.bf16.mxu0 0
        %790 = vmatpush1.bf16.msra.mxu0 0
        %791 = vmatprep.subr.bf16.mxu0 0
        %792 = vmatpush1.bf16.msra.mxu0 0
        %793 = vmatprep.mubr.bf16.mxu0 0
        %794 = vmatmul.mubr.bf16.gmra.mrb[0].mxu0 %v232
        %v795 = vpop.f32.mrb[0].mxu0
        %v796 = vadd.f32 %v550, %v795
        %v797 = vpop.f32.mrb[0].mxu0
        %v798 = vadd.f32 %v552, %v797
        %v799 = vpop.f32.mrb[0].mxu0
        %v800 = vadd.f32 %v554, %v799
        %v801 = vpop.f32.mrb[0].mxu0
        %v802 = vadd.f32 %v556, %v801
        %803 = vdwg.mxu0
        %v804 = vld [vmem:[#allocation2 + $0x200] sm:$0xff]
        %v805 = vld [vmem:[#allocation2 + $0x208] sm:$0xff]
        %v806 = vld [vmem:[#allocation2 + $0x210] sm:$0xff]
        %v807 = vld [vmem:[#allocation2 + $0x218] sm:$0xff]
        %v808 = vld [vmem:[#allocation2 + $0x220] sm:$0xff]
        %v809 = vld [vmem:[#allocation2 + $0x228] sm:$0xff]
        %v810 = vld [vmem:[#allocation2 + $0x230] sm:$0xff]
        %v811 = vld [vmem:[#allocation2 + $0x238] sm:$0xff]
        %v812 = vld [vmem:[#allocation2 + $0x240] sm:$0xff]
        %v813 = vld [vmem:[#allocation2 + $0x248] sm:$0xff]
        %v814 = vld [vmem:[#allocation2 + $0x250] sm:$0xff]
        %v815 = vld [vmem:[#allocation2 + $0x258] sm:$0xff]
        %v816 = vld [vmem:[#allocation2 + $0x260] sm:$0xff]
        %v817 = vld [vmem:[#allocation2 + $0x268] sm:$0xff]
        %v818 = vld [vmem:[#allocation2 + $0x270] sm:$0xff]
        %v819 = vld [vmem:[#allocation2 + $0x278] sm:$0xff]
        %v820 = vld [vmem:[#allocation2 + $0x280] sm:$0xff]
        %v821 = vld [vmem:[#allocation2 + $0x288] sm:$0xff]
        %v822 = vld [vmem:[#allocation2 + $0x290] sm:$0xff]
        %v823 = vld [vmem:[#allocation2 + $0x298] sm:$0xff]
        %v824 = vld [vmem:[#allocation2 + $0x2a0] sm:$0xff]
        %v825 = vld [vmem:[#allocation2 + $0x2a8] sm:$0xff]
        %v826 = vld [vmem:[#allocation2 + $0x2b0] sm:$0xff]
        %v827 = vld [vmem:[#allocation2 + $0x2b8] sm:$0xff]
        %v828 = vld [vmem:[#allocation2 + $0x2c0] sm:$0xff]
        %v829 = vld [vmem:[#allocation2 + $0x2c8] sm:$0xff]
        %v830 = vld [vmem:[#allocation2 + $0x2d0] sm:$0xff]
        %v831 = vld [vmem:[#allocation2 + $0x2d8] sm:$0xff]
        %v832 = vld [vmem:[#allocation2 + $0x2e0] sm:$0xff]
        %v833 = vld [vmem:[#allocation2 + $0x2e8] sm:$0xff]
        %v834 = vld [vmem:[#allocation2 + $0x2f0] sm:$0xff]
        %v835 = vld [vmem:[#allocation2 + $0x2f8] sm:$0xff]
        %vm838 = vcmask 1046528
        %v839 = vrot.slane %v232, 1
        %v840 = vrot.slane %v265, 1
        %v841 = vsel %vm838, %v839, %v840
        %v875 = vunpack.c.l.b16 %v804
        %v876 = vunpack.c.h.b16 %v804
        %v877 = vunpack.c.l.b16 %v805
        %v878 = vunpack.c.h.b16 %v805
        %v879 = vunpack.c.l.b16 %v806
        %v880 = vunpack.c.h.b16 %v806
        %v881 = vunpack.c.l.b16 %v807
        %v882 = vunpack.c.h.b16 %v807
        %v883 = vunpack.c.l.b16 %v808
        %v884 = vunpack.c.h.b16 %v808
        %v885 = vunpack.c.l.b16 %v809
        %v886 = vunpack.c.h.b16 %v809
        %v887 = vunpack.c.l.b16 %v810
        %v888 = vunpack.c.h.b16 %v810
        %v889 = vunpack.c.l.b16 %v811
        %v890 = vunpack.c.h.b16 %v811
        %v891 = vunpack.c.l.b16 %v812
        %v892 = vunpack.c.h.b16 %v812
        %v893 = vunpack.c.l.b16 %v813
        %v894 = vunpack.c.h.b16 %v813
        %v895 = vunpack.c.l.b16 %v814
        %v896 = vunpack.c.h.b16 %v814
        %v897 = vunpack.c.l.b16 %v815
        %v898 = vunpack.c.h.b16 %v815
        %v899 = vunpack.c.l.b16 %v816
        %v900 = vunpack.c.h.b16 %v816
        %v901 = vunpack.c.l.b16 %v817
        %v902 = vunpack.c.h.b16 %v817
        %v903 = vunpack.c.l.b16 %v818
        %v904 = vunpack.c.h.b16 %v818
        %v905 = vunpack.c.l.b16 %v819
        %v906 = vunpack.c.h.b16 %v819
        %v907 = vunpack.c.l.b16 %v820
        %v908 = vunpack.c.h.b16 %v820
        %v909 = vunpack.c.l.b16 %v821
        %v910 = vunpack.c.h.b16 %v821
        %v911 = vunpack.c.l.b16 %v822
        %v912 = vunpack.c.h.b16 %v822
        %v913 = vunpack.c.l.b16 %v823
        %v914 = vunpack.c.h.b16 %v823
        %v915 = vunpack.c.l.b16 %v824
        %v916 = vunpack.c.h.b16 %v824
        %v917 = vunpack.c.l.b16 %v825
        %v918 = vunpack.c.h.b16 %v825
        %v919 = vunpack.c.l.b16 %v826
        %v920 = vunpack.c.h.b16 %v826
        %v921 = vunpack.c.l.b16 %v827
        %v922 = vunpack.c.h.b16 %v827
        %v923 = vunpack.c.l.b16 %v828
        %v924 = vunpack.c.h.b16 %v828
        %v925 = vunpack.c.l.b16 %v829
        %v926 = vunpack.c.h.b16 %v829
        %v927 = vunpack.c.l.b16 %v830
        %v928 = vunpack.c.h.b16 %v830
        %v929 = vunpack.c.l.b16 %v831
        %v930 = vunpack.c.h.b16 %v831
        %v931 = vunpack.c.l.b16 %v832
        %v932 = vunpack.c.h.b16 %v832
        %v933 = vunpack.c.l.b16 %v833
        %v934 = vunpack.c.h.b16 %v833
        %v935 = vunpack.c.l.b16 %v834
        %v936 = vunpack.c.h.b16 %v834
        %v937 = vunpack.c.l.b16 %v835
        %v938 = vunpack.c.h.b16 %v835
        %v939 = vpack.c.b16 %v879, %v875
        %v940 = vpack.c.b16 %v880, %v876
        %v941 = vpack.c.b16 %v881, %v877
        %v942 = vpack.c.b16 %v882, %v878
        %v943 = vpack.c.b16 %v887, %v883
        %v944 = vpack.c.b16 %v888, %v884
        %v945 = vpack.c.b16 %v889, %v885
        %v946 = vpack.c.b16 %v890, %v886
        %v947 = vpack.c.b16 %v895, %v891
        %v948 = vpack.c.b16 %v896, %v892
        %v949 = vpack.c.b16 %v897, %v893
        %v950 = vpack.c.b16 %v898, %v894
        %v951 = vpack.c.b16 %v903, %v899
        %v952 = vpack.c.b16 %v904, %v900
        %v953 = vpack.c.b16 %v905, %v901
        %v954 = vpack.c.b16 %v906, %v902
        %v955 = vpack.c.b16 %v911, %v907
        %v956 = vpack.c.b16 %v912, %v908
        %v957 = vpack.c.b16 %v913, %v909
        %v958 = vpack.c.b16 %v914, %v910
        %v959 = vpack.c.b16 %v919, %v915
        %v960 = vpack.c.b16 %v920, %v916
        %v961 = vpack.c.b16 %v921, %v917
        %v962 = vpack.c.b16 %v922, %v918
        %v963 = vpack.c.b16 %v927, %v923
        %v964 = vpack.c.b16 %v928, %v924
        %v965 = vpack.c.b16 %v929, %v925
        %v966 = vpack.c.b16 %v930, %v926
        %v967 = vpack.c.b16 %v935, %v931
        %v968 = vpack.c.b16 %v936, %v932
        %v969 = vpack.c.b16 %v937, %v933
        %v970 = vpack.c.b16 %v938, %v934
        %1003 = vmatprep.subr.bf16.mxu0 %v940
        %1004 = vmatpush1.bf16.msra.mxu0 %v939
        %1005 = vmatprep.subr.bf16.mxu0 %v944
        %1006 = vmatpush1.bf16.msra.mxu0 %v943
        %1007 = vmatprep.subr.bf16.mxu0 %v948
        %1008 = vmatpush1.bf16.msra.mxu0 %v947
        %1009 = vmatprep.subr.bf16.mxu0 %v952
        %1010 = vmatpush1.bf16.msra.mxu0 %v951
        %1011 = vmatprep.subr.bf16.mxu0 %v956
        %1012 = vmatpush1.bf16.msra.mxu0 %v955
        %1013 = vmatprep.subr.bf16.mxu0 %v960
        %1014 = vmatpush1.bf16.msra.mxu0 %v959
        %1015 = vmatprep.subr.bf16.mxu0 %v964
        %1016 = vmatpush1.bf16.msra.mxu0 %v963
        %1017 = vmatprep.subr.bf16.mxu0 %v968
        %1018 = vmatpush1.bf16.msra.mxu0 %v967
        %1019 = vmatprep.subr.bf16.mxu0 0
        %1020 = vmatpush1.bf16.msra.mxu0 0
        %1021 = vmatprep.subr.bf16.mxu0 0
        %1022 = vmatpush1.bf16.msra.mxu0 0
        %1023 = vmatprep.subr.bf16.mxu0 0
        %1024 = vmatpush1.bf16.msra.mxu0 0
        %1025 = vmatprep.subr.bf16.mxu0 0
        %1026 = vmatpush1.bf16.msra.mxu0 0
        %1027 = vmatprep.subr.bf16.mxu0 0
        %1028 = vmatpush1.bf16.msra.mxu0 0
        %1029 = vmatprep.subr.bf16.mxu0 0
        %1030 = vmatpush1.bf16.msra.mxu0 0
        %1031 = vmatprep.subr.bf16.mxu0 0
        %1032 = vmatpush1.bf16.msra.mxu0 0
        %1033 = vmatprep.subr.bf16.mxu0 0
        %1034 = vmatpush1.bf16.msra.mxu0 0
        %1035 = vmatprep.mubr.bf16.mxu0 0
        %1036 = vmatmul.mubr.bf16.gmra.mrb[0].mxu0 %v841
        %v1037 = vpop.f32.mrb[0].mxu0
        %v1038 = vadd.f32 0.0, %v1037
        %v1039 = vpop.f32.mrb[0].mxu0
        %v1040 = vadd.f32 0.0, %v1039
        %v1041 = vpop.f32.mrb[0].mxu0
        %v1042 = vadd.f32 0.0, %v1041
        %v1043 = vpop.f32.mrb[0].mxu0
        %v1044 = vadd.f32 0.0, %v1043
        %1045 = vdwg.mxu0
        %1046 = vmatprep.subr.bf16.mxu0 %v942
        %1047 = vmatpush1.bf16.msra.mxu0 %v941
        %1048 = vmatprep.subr.bf16.mxu0 %v946
        %1049 = vmatpush1.bf16.msra.mxu0 %v945
        %1050 = vmatprep.subr.bf16.mxu0 %v950
        %1051 = vmatpush1.bf16.msra.mxu0 %v949
        %1052 = vmatprep.subr.bf16.mxu0 %v954
        %1053 = vmatpush1.bf16.msra.mxu0 %v953
        %1054 = vmatprep.subr.bf16.mxu0 %v958
        %1055 = vmatpush1.bf16.msra.mxu0 %v957
        %1056 = vmatprep.subr.bf16.mxu0 %v962
        %1057 = vmatpush1.bf16.msra.mxu0 %v961
        %1058 = vmatprep.subr.bf16.mxu0 %v966
        %1059 = vmatpush1.bf16.msra.mxu0 %v965
        %1060 = vmatprep.subr.bf16.mxu0 %v970
        %1061 = vmatpush1.bf16.msra.mxu0 %v969
        %1062 = vmatprep.subr.bf16.mxu0 0
        %1063 = vmatpush1.bf16.msra.mxu0 0
        %1064 = vmatprep.subr.bf16.mxu0 0
        %1065 = vmatpush1.bf16.msra.mxu0 0
        %1066 = vmatprep.subr.bf16.mxu0 0
        %1067 = vmatpush1.bf16.msra.mxu0 0
        %1068 = vmatprep.subr.bf16.mxu0 0
        %1069 = vmatpush1.bf16.msra.mxu0 0
        %1070 = vmatprep.subr.bf16.mxu0 0
        %1071 = vmatpush1.bf16.msra.mxu0 0
        %1072 = vmatprep.subr.bf16.mxu0 0
        %1073 = vmatpush1.bf16.msra.mxu0 0
        %1074 = vmatprep.subr.bf16.mxu0 0
        %1075 = vmatpush1.bf16.msra.mxu0 0
        %1076 = vmatprep.subr.bf16.mxu0 0
        %1077 = vmatpush1.bf16.msra.mxu0 0
        %1078 = vmatprep.mubr.bf16.mxu0 0
        %1079 = vmatmul.mubr.bf16.gmra.mrb[0].mxu0 %v841
        %v1080 = vpop.f32.mrb[0].mxu0
        %v1081 = vadd.f32 0.0, %v1080
        %v1082 = vpop.f32.mrb[0].mxu0
        %v1083 = vadd.f32 0.0, %v1082
        %v1084 = vpop.f32.mrb[0].mxu0
        %v1085 = vadd.f32 0.0, %v1084
        %v1086 = vpop.f32.mrb[0].mxu0
        %v1087 = vadd.f32 0.0, %v1086
        %1088 = vdwg.mxu0
        %v1089 = vadd.f32 %v753, %v1038
        %v1090 = vadd.f32 %v755, %v1040
        %v1091 = vadd.f32 %v796, %v1081
        %v1092 = vadd.f32 %v798, %v1083
        %v1093 = vadd.f32 %v757, %v1042
        %v1094 = vadd.f32 %v759, %v1044
        %v1095 = vadd.f32 %v800, %v1085
        %v1096 = vadd.f32 %v802, %v1087
        %v1097 = vmax.f32 %v1089, 0.0
        %v1098 = vmax.f32 %v1090, 0.0
        %v1099 = vmax.f32 %v1091, 0.0
        %v1100 = vmax.f32 %v1092, 0.0
        %v1101 = vmax.f32 %v1093, 0.0
        %v1102 = vmax.f32 %v1094, 0.0
        %v1103 = vmax.f32 %v1095, 0.0
        %v1104 = vmax.f32 %v1096, 0.0
        %v1105 = vadd.f32 %v1097, %v1101
        %v1106 = vadd.f32 %v1098, %v1102
        %v1107 = vadd.f32 %v1099, %v1103
        %v1108 = vadd.f32 %v1100, %v1104
        %v1109 = vpack.c.bf16 %v1105, %v1105
        %v1110 = vpack.c.bf16 %v1106, %v1106
        %v1111 = vpack.c.bf16 %v1107, %v1107
        %v1112 = vpack.c.bf16 %v1108, %v1108
        %v1113 = vld [vmem:[#allocation5] sm:$0xf]
        %v1114 = vld [vmem:[#allocation5 + $0x4] sm:$0xf]
        %v1115 = vld [vmem:[#allocation5 + $0x8] sm:$0xf]
        %v1116 = vld [vmem:[#allocation5 + $0xc] sm:$0xf]
        %v1117 = vld [vmem:[#allocation5 + $0x10] sm:$0xf]
        %v1118 = vld [vmem:[#allocation5 + $0x14] sm:$0xf]
        %v1119 = vld [vmem:[#allocation5 + $0x18] sm:$0xf]
        %v1120 = vld [vmem:[#allocation5 + $0x1c] sm:$0xf]
        %v1121 = vld [vmem:[#allocation5 + $0x20] sm:$0xf]
        %v1122 = vld [vmem:[#allocation5 + $0x24] sm:$0xf]
        %v1123 = vld [vmem:[#allocation5 + $0x28] sm:$0xf]
        %v1124 = vld [vmem:[#allocation5 + $0x2c] sm:$0xf]
        %v1125 = vld [vmem:[#allocation5 + $0x30] sm:$0xf]
        %v1126 = vld [vmem:[#allocation5 + $0x34] sm:$0xf]
        %v1127 = vld [vmem:[#allocation5 + $0x38] sm:$0xf]
        %v1128 = vld [vmem:[#allocation5 + $0x3c] sm:$0xf]
        %v1129 = vld [vmem:[#allocation5 + $0x40] sm:$0xf]
        %v1130 = vld [vmem:[#allocation5 + $0x44] sm:$0xf]
        %v1131 = vld [vmem:[#allocation5 + $0x48] sm:$0xf]
        %v1132 = vld [vmem:[#allocation5 + $0x4c] sm:$0xf]
        %v1133 = vld [vmem:[#allocation5 + $0x50] sm:$0xf]
        %v1134 = vld [vmem:[#allocation5 + $0x54] sm:$0xf]
        %v1135 = vld [vmem:[#allocation5 + $0x58] sm:$0xf]
        %v1136 = vld [vmem:[#allocation5 + $0x5c] sm:$0xf]
        %v1137 = vld [vmem:[#allocation5 + $0x60] sm:$0xf]
        %v1138 = vld [vmem:[#allocation5 + $0x64] sm:$0xf]
        %v1139 = vld [vmem:[#allocation5 + $0x68] sm:$0xf]
        %v1140 = vld [vmem:[#allocation5 + $0x6c] sm:$0xf]
        %v1141 = vld [vmem:[#allocation5 + $0x70] sm:$0xf]
        %v1142 = vld [vmem:[#allocation5 + $0x74] sm:$0xf]
        %v1143 = vld [vmem:[#allocation5 + $0x78] sm:$0xf]
        %v1144 = vld [vmem:[#allocation5 + $0x7c] sm:$0xf]
        %v1145 = vld [vmem:[#allocation5 + $0x80] sm:$0xf]
        %v1146 = vld [vmem:[#allocation5 + $0x84] sm:$0xf]
        %v1147 = vld [vmem:[#allocation5 + $0x88] sm:$0xf]
        %v1148 = vld [vmem:[#allocation5 + $0x8c] sm:$0xf]
        %v1149 = vld [vmem:[#allocation5 + $0x90] sm:$0xf]
        %v1150 = vld [vmem:[#allocation5 + $0x94] sm:$0xf]
        %v1151 = vld [vmem:[#allocation5 + $0x98] sm:$0xf]
        %v1152 = vld [vmem:[#allocation5 + $0x9c] sm:$0xf]
        %v1153 = vld [vmem:[#allocation5 + $0xa0] sm:$0xf]
        %v1154 = vld [vmem:[#allocation5 + $0xa4] sm:$0xf]
        %v1155 = vld [vmem:[#allocation5 + $0xa8] sm:$0xf]
        %v1156 = vld [vmem:[#allocation5 + $0xac] sm:$0xf]
        %v1157 = vld [vmem:[#allocation5 + $0xb0] sm:$0xf]
        %v1158 = vld [vmem:[#allocation5 + $0xb4] sm:$0xf]
        %v1159 = vld [vmem:[#allocation5 + $0xb8] sm:$0xf]
        %v1160 = vld [vmem:[#allocation5 + $0xbc] sm:$0xf]
        %v1161 = vld [vmem:[#allocation5 + $0xc0] sm:$0xf]
        %v1162 = vld [vmem:[#allocation5 + $0xc4] sm:$0xf]
        %v1163 = vld [vmem:[#allocation5 + $0xc8] sm:$0xf]
        %v1164 = vld [vmem:[#allocation5 + $0xcc] sm:$0xf]
        %v1165 = vld [vmem:[#allocation5 + $0xd0] sm:$0xf]
        %v1166 = vld [vmem:[#allocation5 + $0xd4] sm:$0xf]
        %v1167 = vld [vmem:[#allocation5 + $0xd8] sm:$0xf]
        %v1168 = vld [vmem:[#allocation5 + $0xdc] sm:$0xf]
        %v1169 = vld [vmem:[#allocation5 + $0xe0] sm:$0xf]
        %v1170 = vld [vmem:[#allocation5 + $0xe4] sm:$0xf]
        %v1171 = vld [vmem:[#allocation5 + $0xe8] sm:$0xf]
        %v1172 = vld [vmem:[#allocation5 + $0xec] sm:$0xf]
        %v1173 = vld [vmem:[#allocation5 + $0xf0] sm:$0xf]
        %v1174 = vld [vmem:[#allocation5 + $0xf4] sm:$0xf]
        %v1175 = vld [vmem:[#allocation5 + $0xf8] sm:$0xf]
        %v1176 = vld [vmem:[#allocation5 + $0xfc] sm:$0xf]
        %v1241 = vunpack.c.l.b16 %v1113
        %v1242 = vunpack.c.l.b16 %v1114
        %v1243 = vunpack.c.l.b16 %v1115
        %v1244 = vunpack.c.l.b16 %v1116
        %v1245 = vunpack.c.l.b16 %v1117
        %v1246 = vunpack.c.l.b16 %v1118
        %v1247 = vunpack.c.l.b16 %v1119
        %v1248 = vunpack.c.l.b16 %v1120
        %v1249 = vunpack.c.l.b16 %v1121
        %v1250 = vunpack.c.l.b16 %v1122
        %v1251 = vunpack.c.l.b16 %v1123
        %v1252 = vunpack.c.l.b16 %v1124
        %v1253 = vunpack.c.l.b16 %v1125
        %v1254 = vunpack.c.l.b16 %v1126
        %v1255 = vunpack.c.l.b16 %v1127
        %v1256 = vunpack.c.l.b16 %v1128
        %v1257 = vunpack.c.l.b16 %v1129
        %v1258 = vunpack.c.l.b16 %v1130
        %v1259 = vunpack.c.l.b16 %v1131
        %v1260 = vunpack.c.l.b16 %v1132
        %v1261 = vunpack.c.l.b16 %v1133
        %v1262 = vunpack.c.l.b16 %v1134
        %v1263 = vunpack.c.l.b16 %v1135
        %v1264 = vunpack.c.l.b16 %v1136
        %v1265 = vunpack.c.l.b16 %v1137
        %v1266 = vunpack.c.l.b16 %v1138
        %v1267 = vunpack.c.l.b16 %v1139
        %v1268 = vunpack.c.l.b16 %v1140
        %v1269 = vunpack.c.l.b16 %v1141
        %v1270 = vunpack.c.l.b16 %v1142
        %v1271 = vunpack.c.l.b16 %v1143
        %v1272 = vunpack.c.l.b16 %v1144
        %v1273 = vunpack.c.l.b16 %v1145
        %v1274 = vunpack.c.l.b16 %v1146
        %v1275 = vunpack.c.l.b16 %v1147
        %v1276 = vunpack.c.l.b16 %v1148
        %v1277 = vunpack.c.l.b16 %v1149
        %v1278 = vunpack.c.l.b16 %v1150
        %v1279 = vunpack.c.l.b16 %v1151
        %v1280 = vunpack.c.l.b16 %v1152
        %v1281 = vunpack.c.l.b16 %v1153
        %v1282 = vunpack.c.l.b16 %v1154
        %v1283 = vunpack.c.l.b16 %v1155
        %v1284 = vunpack.c.l.b16 %v1156
        %v1285 = vunpack.c.l.b16 %v1157
        %v1286 = vunpack.c.l.b16 %v1158
        %v1287 = vunpack.c.l.b16 %v1159
        %v1288 = vunpack.c.l.b16 %v1160
        %v1289 = vunpack.c.l.b16 %v1161
        %v1290 = vunpack.c.l.b16 %v1162
        %v1291 = vunpack.c.l.b16 %v1163
        %v1292 = vunpack.c.l.b16 %v1164
        %v1293 = vunpack.c.l.b16 %v1165
        %v1294 = vunpack.c.l.b16 %v1166
        %v1295 = vunpack.c.l.b16 %v1167
        %v1296 = vunpack.c.l.b16 %v1168
        %v1297 = vunpack.c.l.b16 %v1169
        %v1298 = vunpack.c.l.b16 %v1170
        %v1299 = vunpack.c.l.b16 %v1171
        %v1300 = vunpack.c.l.b16 %v1172
        %v1301 = vunpack.c.l.b16 %v1173
        %v1302 = vunpack.c.l.b16 %v1174
        %v1303 = vunpack.c.l.b16 %v1175
        %v1304 = vunpack.c.l.b16 %v1176
        %v1305 = vpack.c.b16 %v1242, %v1241
        %v1306 = vpack.c.b16 %v1244, %v1243
        %v1307 = vpack.c.b16 %v1246, %v1245
        %v1308 = vpack.c.b16 %v1248, %v1247
        %v1309 = vpack.c.b16 %v1250, %v1249
        %v1310 = vpack.c.b16 %v1252, %v1251
        %v1311 = vpack.c.b16 %v1254, %v1253
        %v1312 = vpack.c.b16 %v1256, %v1255
        %v1313 = vpack.c.b16 %v1258, %v1257
        %v1314 = vpack.c.b16 %v1260, %v1259
        %v1315 = vpack.c.b16 %v1262, %v1261
        %v1316 = vpack.c.b16 %v1264, %v1263
        %v1317 = vpack.c.b16 %v1266, %v1265
        %v1318 = vpack.c.b16 %v1268, %v1267
        %v1319 = vpack.c.b16 %v1270, %v1269
        %v1320 = vpack.c.b16 %v1272, %v1271
        %v1321 = vpack.c.b16 %v1274, %v1273
        %v1322 = vpack.c.b16 %v1276, %v1275
        %v1323 = vpack.c.b16 %v1278, %v1277
        %v1324 = vpack.c.b16 %v1280, %v1279
        %v1325 = vpack.c.b16 %v1282, %v1281
        %v1326 = vpack.c.b16 %v1284, %v1283
        %v1327 = vpack.c.b16 %v1286, %v1285
        %v1328 = vpack.c.b16 %v1288, %v1287
        %v1329 = vpack.c.b16 %v1290, %v1289
        %v1330 = vpack.c.b16 %v1292, %v1291
        %v1331 = vpack.c.b16 %v1294, %v1293
        %v1332 = vpack.c.b16 %v1296, %v1295
        %v1333 = vpack.c.b16 %v1298, %v1297
        %v1334 = vpack.c.b16 %v1300, %v1299
        %v1335 = vpack.c.b16 %v1302, %v1301
        %v1336 = vpack.c.b16 %v1304, %v1303
        %1369 = vmatprep.subr.bf16.mxu0 0
        %1370 = vmatpush1.bf16.msra.mxu0 %v1305
        %1371 = vmatprep.subr.bf16.mxu0 0
        %1372 = vmatpush1.bf16.msra.mxu0 %v1306
        %1373 = vmatprep.subr.bf16.mxu0 0
        %1374 = vmatpush1.bf16.msra.mxu0 %v1307
        %1375 = vmatprep.subr.bf16.mxu0 0
        %1376 = vmatpush1.bf16.msra.mxu0 %v1308
        %1377 = vmatprep.subr.bf16.mxu0 0
        %1378 = vmatpush1.bf16.msra.mxu0 %v1309
        %1379 = vmatprep.subr.bf16.mxu0 0
        %1380 = vmatpush1.bf16.msra.mxu0 %v1310
        %1381 = vmatprep.subr.bf16.mxu0 0
        %1382 = vmatpush1.bf16.msra.mxu0 %v1311
        %1383 = vmatprep.subr.bf16.mxu0 0
        %1384 = vmatpush1.bf16.msra.mxu0 %v1312
        %1385 = vmatprep.subr.bf16.mxu0 0
        %1386 = vmatpush1.bf16.msra.mxu0 %v1313
        %1387 = vmatprep.subr.bf16.mxu0 0
        %1388 = vmatpush1.bf16.msra.mxu0 %v1314
        %1389 = vmatprep.subr.bf16.mxu0 0
        %1390 = vmatpush1.bf16.msra.mxu0 %v1315
        %1391 = vmatprep.subr.bf16.mxu0 0
        %1392 = vmatpush1.bf16.msra.mxu0 %v1316
        %1393 = vmatprep.subr.bf16.mxu0 0
        %1394 = vmatpush1.bf16.msra.mxu0 %v1317
        %1395 = vmatprep.subr.bf16.mxu0 0
        %1396 = vmatpush1.bf16.msra.mxu0 %v1318
        %1397 = vmatprep.subr.bf16.mxu0 0
        %1398 = vmatpush1.bf16.msra.mxu0 %v1319
        %1399 = vmatprep.subr.bf16.mxu0 0
        %1400 = vmatpush1.bf16.msra.mxu0 %v1320
        %1401 = vmatprep.mubr.bf16.mxu0 %v1110
        %1402 = vmatmul.mubr.bf16.gmra.mrb[0].mxu0 %v1109
        %v1403 = vpop.f32.mrb[0].mxu0
        %v1404 = vadd.f32 0.0, %v1403
        %v1405 = vpop.f32.mrb[0].mxu0
        %v1406 = vpop.f32.mrb[0].mxu0
        %v1407 = vpop.f32.mrb[0].mxu0
        %1408 = vdwg.mxu0
        %1409 = vmatprep.subr.bf16.mxu0 0
        %1410 = vmatpush1.bf16.msra.mxu0 %v1321
        %1411 = vmatprep.subr.bf16.mxu0 0
        %1412 = vmatpush1.bf16.msra.mxu0 %v1322
        %1413 = vmatprep.subr.bf16.mxu0 0
        %1414 = vmatpush1.bf16.msra.mxu0 %v1323
        %1415 = vmatprep.subr.bf16.mxu0 0
        %1416 = vmatpush1.bf16.msra.mxu0 %v1324
        %1417 = vmatprep.subr.bf16.mxu0 0
        %1418 = vmatpush1.bf16.msra.mxu0 %v1325
        %1419 = vmatprep.subr.bf16.mxu0 0
        %1420 = vmatpush1.bf16.msra.mxu0 %v1326
        %1421 = vmatprep.subr.bf16.mxu0 0
        %1422 = vmatpush1.bf16.msra.mxu0 %v1327
        %1423 = vmatprep.subr.bf16.mxu0 0
        %1424 = vmatpush1.bf16.msra.mxu0 %v1328
        %1425 = vmatprep.subr.bf16.mxu0 0
        %1426 = vmatpush1.bf16.msra.mxu0 %v1329
        %1427 = vmatprep.subr.bf16.mxu0 0
        %1428 = vmatpush1.bf16.msra.mxu0 %v1330
        %1429 = vmatprep.subr.bf16.mxu0 0
        %1430 = vmatpush1.bf16.msra.mxu0 %v1331
        %1431 = vmatprep.subr.bf16.mxu0 0
        %1432 = vmatpush1.bf16.msra.mxu0 %v1332
        %1433 = vmatprep.subr.bf16.mxu0 0
        %1434 = vmatpush1.bf16.msra.mxu0 %v1333
        %1435 = vmatprep.subr.bf16.mxu0 0
        %1436 = vmatpush1.bf16.msra.mxu0 %v1334
        %1437 = vmatprep.subr.bf16.mxu0 0
        %1438 = vmatpush1.bf16.msra.mxu0 %v1335
        %1439 = vmatprep.subr.bf16.mxu0 0
        %1440 = vmatpush1.bf16.msra.mxu0 %v1336
        %1441 = vmatprep.mubr.bf16.mxu0 %v1112
        %1442 = vmatmul.mubr.bf16.gmra.mrb[0].mxu0 %v1111
        %v1443 = vpop.f32.mrb[0].mxu0
        %v1444 = vadd.f32 %v1404, %v1443
        %v1445 = vpop.f32.mrb[0].mxu0
        %v1446 = vpop.f32.mrb[0].mxu0
        %v1447 = vpop.f32.mrb[0].mxu0
        %1448 = vdwg.mxu0
        %v1449 = vrot.slane %v1444, 4
        %v1450 = vadd.f32 %v1444, %v1449
        %v1451 = vrot.slane %v1450, 2
        %v1452 = vadd.f32 %v1450, %v1451
        %v1453 = vrot.slane %v1452, 1
        %v1454 = vadd.f32 %v1452, %v1453
        %v1455 = vld [vmem:[%s3] sm:$0x1]
        %v1456 = vadd.f32 %v1454, %v1455
        %1457 = vst [vmem:[%s219] sm:$0x1] %v1456
        %s1458 = sand.u32 %s117, 1
        %s1459 = scalar_lea.sflag [#allocation4], %s1458
        %s1460 = sand.u32 %s117, 1
        %s1461 = scalar_lea.vmem [#allocation7], %s1460
        // Predicated region
        $region45: #{tpu_custom_call.1} parent=35 // pred_check
          %p1462 = pneg %p127
        $region46: #{tpu_custom_call.1} parent=35 // pred_check_branch
          %1464 = sbr.rel (%p1462) target = $region48
        $region47: #{tpu_custom_call.1} parent=35 // pred_region
          %s1466 = ssub.s32 16, 16
          %1467 = vsyncadd %s1459, %s1466
          %s1468 = smul.addr %s20, 16
          %s1469 = scalar_lea.hbm %s4, %s1468
          %s1471 = sshll.u32 %s1461, 4
          %s1472 = int_to_ptr.vmem [resolvable:$true] %s1471
          %1474 = dma.vmem_to_hbm [thread:$0]  %s1472, 16, %s1469, %s1459
        $region48: #{tpu_custom_call.1} parent=35 // pred_fallthru
          _
      $region36: #{tpu_custom_call.1} parent=5 // pred_fallthru
        _
      %p1475 = scmp.le.s32.totalorder 2, %s15
      // Predicated region
      $region49: #{tpu_custom_call.1} parent=5 // pred_check
        %p1476 = pneg %p1475
      $region50: #{tpu_custom_call.1} parent=5 // pred_check_branch
        %1478 = sbr.rel (%p1476) target = $region52
      $region51: #{tpu_custom_call.1} parent=5 // pred_region
        %s1479 = ssub.s32 %s15, 2
        // Predicated region
        $region53: #{tpu_custom_call.1} parent=51 // pred_check
          %p1480 = pneg %p133
        $region54: #{tpu_custom_call.1} parent=51 // pred_check_branch
          %1482 = sbr.rel (%p1480) target = $region56
        $region55: #{tpu_custom_call.1} parent=51 // pred_region
          %s1483 = sand.u32 %s118, 1
          %s1484 = scalar_lea.sflag [#allocation4], %s1483
          %s1485 = sand.u32 %s118, 1
          %s1486 = scalar_lea.vmem [#allocation7], %s1485
          %1487 = dma.done %s1484, 16
        $region56: #{tpu_custom_call.1} parent=51 // pred_fallthru
          _
      $region52: #{tpu_custom_call.1} parent=5 // pred_fallthru
        _
    $region6: #{tpu_custom_call.1} parent=1 // loop_footer
      %s19 = sadd.s32 1, %s15
    $region7: #{tpu_custom_call.1} parent=1 // loop_footer_branch
      %14 = sbr.rel target = $region3
    $region8: #{tpu_custom_call.1} parent=1 // loop_exit
      _
    %1488 = vsyncpa [#allocation3], 1
    %s1489 = scalar_lea.sflag [#allocation3], 1
    %1490 = vsyncpa %s1489, 1
    %1491 = vsyncpa [#allocation6], 1
    %1492 = vsyncpa [#allocation4], 1
    %s1493 = scalar_lea.sflag [#allocation4], 1
    %1494 = vsyncpa %s1493, 1

</llo_original>
